<compile_context>
chip_gen: v7x
topology: tpu7x:2x2x1
jax: 0.10.0
libtpu: 0.0.40
codegen_flags: <defaults>
</compile_context>

<pallas_src>
import math

import numpy as np
import jax
import jax.numpy as jnp
from jax import lax
from jax.experimental import pallas as pl
from jax.experimental.pallas import tpu as pltpu

F32 = jnp.float32
BF16 = jnp.bfloat16


def _pick_tile(n, cands):
    """Largest candidate < n dividing n, else n (block may always equal the full dim)."""
    for c in cands:
        if c < n and n % c == 0:
            return c
    return n


def _interp_matrix(out_size, in_size):
    """1-D interpolation matrix matching torch F.interpolate(bilinear, align_corners=False)."""
    M = np.zeros((out_size, in_size), np.float32)
    if in_size == 1:
        M[:, 0] = 1.0
        return M
    scale = in_size / out_size
    for o in range(out_size):
        src = max((o + 0.5) * scale - 0.5, 0.0)
        i0 = min(int(np.floor(src)), in_size - 1)
        i1 = min(i0 + 1, in_size - 1)
        lam = src - i0
        M[o, i0] += 1.0 - lam
        M[o, i1] += lam
    return M


# -----------------------------------------------------------------------------
# Kernel 1: separable bilinear resize, H direction (optionally fused with the
# pending IDLC segmentation add).  x is presented as (N, hin, win*C) so the H
# interpolation is a single matmul from the left; lanes stay win*C (>=128).
# -----------------------------------------------------------------------------
def _make_resize_h_kernel(has_add):
    def kernel(*refs):
        if has_add:
            mh_ref, x_ref, a_ref, o_ref = refs
        else:
            mh_ref, x_ref, o_ref = refs
        x = x_ref[0]
        if has_add:
            x = x + a_ref[0]
        o_ref[0] = jnp.dot(mh_ref[...], x.astype(BF16),
                           preferred_element_type=F32)
    return kernel


def resize_h(x, mh, add=None):
    """x: (N, hin, WC) f32; mh: (hout, hin) bf16 -> (N, hout, WC) f32."""
    N, hin, WC = x.shape
    hout = mh.shape[0]
    twc = _pick_tile(WC, (4096, 2048, 1024, 512, 256, 128))
    grid = (N, WC // twc)
    in_specs = [pl.BlockSpec((hout, hin), lambda n, w: (0, 0)),
                pl.BlockSpec((1, hin, twc), lambda n, w: (n, 0, w))]
    args = [mh, x]
    if add is not None:
        in_specs.append(pl.BlockSpec((1, hin, twc), lambda n, w: (n, 0, w)))
        args.append(add)
    return pl.pallas_call(
        _make_resize_h_kernel(add is not None),
        out_shape=jax.ShapeDtypeStruct((N, hout, WC), F32),
        grid=grid,
        in_specs=in_specs,
        out_specs=pl.BlockSpec((1, hout, twc), lambda n, w: (n, 0, w)),
        compiler_params=pltpu.CompilerParams(
            dimension_semantics=("parallel", "parallel")),
    )(*args)


# -----------------------------------------------------------------------------
# Kernel 2: separable bilinear resize, W direction.  Batched matmul over the
# (tiled) H dimension: (hs, ws, win) x (hs, win, C) -> (hs, ws, C); channels
# stay in the 128-lane dimension throughout.
# -----------------------------------------------------------------------------
def _make_resize_w_kernel(ths, ws, win):
    def kernel(mw_ref, u_ref, o_ref):
        u = u_ref[0].astype(BF16)                                    # (ths, win, C)
        mwb = jnp.broadcast_to(mw_ref[...][None], (ths, ws, win))    # bf16
        o_ref[0] = jnp.einsum("how,hwc->hoc", mwb, u,
                              preferred_element_type=F32)
    return kernel


def resize_w(u, mw):
    """u: (N, hs, win, C) f32; mw: (ws, win) bf16 -> (N, hs, ws, C) f32."""
    N, hs, win, C = u.shape
    ws = mw.shape[0]
    ths = _pick_tile(hs, (64, 32, 16, 8))
    grid = (N, hs // ths)
    return pl.pallas_call(
        _make_resize_w_kernel(ths, ws, win),
        out_shape=jax.ShapeDtypeStruct((N, hs, ws, C), F32),
        grid=grid,
        in_specs=[pl.BlockSpec((ws, win), lambda n, t: (0, 0)),
                  pl.BlockSpec((1, ths, win, C), lambda n, t: (n, t, 0, 0))],
        out_specs=pl.BlockSpec((1, ths, ws, C), lambda n, t: (n, t, 0, 0)),
        compiler_params=pltpu.CompilerParams(
            dimension_semantics=("parallel", "parallel")),
    )(mw, u)


# -----------------------------------------------------------------------------
# Kernel 3: fused [optional add] + [optional skip bottleneck (BN+ReLU+1x1) add]
#           + BatchNorm(eval) + ReLU + 3x3 conv.
# The 3x3 conv is 9 shifted bf16 matmuls over the flattened spatial dim; the row
# halo comes from a bf16 VMEM scratch whose interior is fully rewritten each step
# (only the 2*(W+1) border rows are zeroed, every step -> megacore-safe), column
# wrap is masked only for the 6 dx != 0 taps.
# -----------------------------------------------------------------------------
def _make_conv3x3_kernel(H, W, C, Cout, has_skip, has_add):
    HW = H * W
    P = W + 1  # flat zero padding on each side of the spatial axis (covers |dy*W+dx|)

    def kernel(*refs):
        i = 0
        x_ref = refs[i]; i += 1
        a_ref = None
        if has_add:
            a_ref = refs[i]; i += 1
        if has_skip:
            skip_ref = refs[i]; i += 1
            bsc_ref = refs[i]; i += 1
            bsh_ref = refs[i]; i += 1
            wbot_ref = refs[i]; i += 1
        sc_ref = refs[i]; i += 1
        sh_ref = refs[i]; i += 1
        w_ref = refs[i]; i += 1
        mL_ref = refs[i]; i += 1
        mR_ref = refs[i]; i += 1
        o_ref = refs[i]; i += 1
        pad_ref = refs[i]; i += 1

        x = x_ref[0]                                        # (HW, C) f32
        if has_add:
            x = x + a_ref[0]
        if has_skip:
            # fused 1x1 bottleneck on the skip: BN(eval) + ReLU + 1x1 conv
            sb = jnp.maximum(skip_ref[0] * bsc_ref[...] + bsh_ref[...], 0.0)
            x = x + jnp.dot(sb.astype(BF16), wbot_ref[...],
                            preferred_element_type=F32)
        y = jnp.maximum(x * sc_ref[...] + sh_ref[...], 0.0)

        # zero only the two border strips (interior is fully overwritten below)
        pad_ref[pl.ds(0, P), :] = jnp.zeros((P, C), BF16)
        pad_ref[pl.ds(P + HW, P), :] = jnp.zeros((P, C), BF16)
        pad_ref[pl.ds(P, HW), :] = y.astype(BF16)

        acc = jnp.zeros((HW, Cout), F32)
        t = 0
        for dy in (-1, 0, 1):
            for dx in (-1, 0, 1):
                off = dy * W + dx
                patch = pad_ref[pl.ds(P + off, HW), :]       # bf16
                if dx == -1:
                    patch = patch * mL_ref[...]
                elif dx == 1:
                    patch = patch * mR_ref[...]
                acc = acc + jnp.dot(patch, w_ref[t],
                                    preferred_element_type=F32)
                t += 1
        o_ref[0] = acc

    return kernel


def _col_masks(H, W):
    cols = np.arange(H * W) % W
    mL = (cols >= 1).astype(np.float32)[:, None]        # valid source for dx = -1
    mR = (cols <= W - 2).astype(np.float32)[:, None]    # valid source for dx = +1
    return jnp.asarray(mL, dtype=BF16), jnp.asarray(mR, dtype=BF16)


def conv3x3_bn_relu(x, scale, shift, w, *, H, W, skip=None, bot=None, add=None):
    """x: (N, HW, C) f32; scale/shift: (1, C); w: (9, C, Cout) bf16.
    Optional: add (N, HW, C); skip (N, HW, Cs) + bot=(bot_scale, bot_shift, w_bot bf16)."""
    N, HW, C = x.shape
    _, _, Cout = w.shape
    has_add = add is not None
    has_skip = skip is not None
    mL, mR = _col_masks(H, W)
    P = W + 1

    in_specs = [pl.BlockSpec((1, HW, C), lambda n: (n, 0, 0))]
    args = [x]
    if has_add:
        in_specs.append(pl.BlockSpec((1, HW, C), lambda n: (n, 0, 0)))
        args.append(add)
    if has_skip:
        bsc, bsh, wbot = bot
        Cs = skip.shape[-1]
        in_specs += [pl.BlockSpec((1, HW, Cs), lambda n: (n, 0, 0)),
                     pl.BlockSpec((1, Cs), lambda n: (0, 0)),
                     pl.BlockSpec((1, Cs), lambda n: (0, 0)),
                     pl.BlockSpec((Cs, C), lambda n: (0, 0))]
        args += [skip, bsc, bsh, wbot]
    in_specs += [pl.BlockSpec((1, C), lambda n: (0, 0)),
                 pl.BlockSpec((1, C), lambda n: (0, 0)),
                 pl.BlockSpec((9, C, Cout), lambda n: (0, 0, 0)),
                 pl.BlockSpec((HW, 1), lambda n: (0, 0)),
                 pl.BlockSpec((HW, 1), lambda n: (0, 0))]
    args += [scale, shift, w, mL, mR]

    # TODO(synk): at real SwiftNet resolutions add a spatial (HW) tile grid axis with a
    # +/-(W+1)-row halo so blocks stay within per-generation VMEM budgets (v7x: 64 MiB/TC).
    return pl.pallas_call(
        _make_conv3x3_kernel(H, W, C, Cout, has_skip, has_add),
        out_shape=jax.ShapeDtypeStruct((N, HW, Cout), F32),
        grid=(N,),
        in_specs=in_specs,
        out_specs=pl.BlockSpec((1, HW, Cout), lambda n: (n, 0, 0)),
        scratch_shapes=[pltpu.VMEM((HW + 2 * P, C), BF16)],
        compiler_params=pltpu.CompilerParams(dimension_semantics=("parallel",)),
    )(*args)


# -----------------------------------------------------------------------------
# Kernel 4: lane-dense tail.  (N, 3, h4, w4) logits -> separable bilinear resize
# to image size -> sigmoid -> (x - MEAN) / STD, all in (C, H, W) layout so the
# image width sits in the 128-lane dimension.  Tiled over output rows.
# -----------------------------------------------------------------------------
def _make_final_kernel(mean, istd):
    def kernel(mh_ref, mwT_ref, x_ref, o_ref):
        for c in range(3):
            t = x_ref[0, c].astype(BF16)                                     # (h4, w4)
            u = jnp.dot(mh_ref[...], t, preferred_element_type=F32)          # (th, w4)
            v = jnp.dot(u.astype(BF16), mwT_ref[...],
                        preferred_element_type=F32)                          # (th, wi)
            s = 1.0 / (1.0 + jnp.exp(-v))
            o_ref[0, c] = (s - mean[c]) * istd[c]
    return kernel


def final_resize_sigmoid_norm(xt, hi, wi, mean, std):
    """xt: (N, 3, h4, w4) f32 -> (N, 3, hi, wi) f32."""
    N, _, h4, w4 = xt.shape
    mh = jnp.asarray(_interp_matrix(hi, h4), dtype=BF16)        # (hi, h4)
    mwT = jnp.asarray(_interp_matrix(wi, w4).T, dtype=BF16)     # (w4, wi)
    th = _pick_tile(hi, (512, 256, 128, 64, 32, 16, 8))
    grid = (N, hi // th)
    mean_t = tuple(float(v) for v in np.asarray(mean).reshape(-1))
    istd_t = tuple(1.0 / float(v) for v in np.asarray(std).reshape(-1))
    return pl.pallas_call(
        _make_final_kernel(mean_t, istd_t),
        out_shape=jax.ShapeDtypeStruct((N, 3, hi, wi), F32),
        grid=grid,
        in_specs=[pl.BlockSpec((th, h4), lambda n, t: (t, 0)),
                  pl.BlockSpec((w4, wi), lambda n, t: (0, 0)),
                  pl.BlockSpec((1, 3, h4, w4), lambda n, t: (n, 0, 0, 0))],
        out_specs=pl.BlockSpec((1, 3, th, wi), lambda n, t: (n, 0, t, 0)),
        compiler_params=pltpu.CompilerParams(
            dimension_semantics=("parallel", "parallel")),
    )(mh, mwT, xt)


# -----------------------------------------------------------------------------
# Parameters (deterministic synthetic init mirroring the module's __init__)
# -----------------------------------------------------------------------------
def _kaiming(key, kk, cin, cout):
    # kaiming_normal_(mode='fan_out', nonlinearity='relu'): std = sqrt(2 / (Cout*K*K))
    std = math.sqrt(2.0 / (cout * kk))
    return jax.random.normal(key, (kk, cin, cout), F32) * std


def init_params(key, skip_channels=(64, 32, 16), num_maps_in=128, num_features=128,
                eps=1e-5):
    # BatchNorm in eval mode with running_mean=0, running_var=1, gamma=1, beta=0
    # folded into per-channel (scale, shift).
    # TODO(synk): train-mode BatchNorm (batch statistics) is not implemented.
    def bn(c):
        return (jnp.ones((1, c), F32) / jnp.sqrt(1.0 + eps), jnp.zeros((1, c), F32))

    keys = jax.random.split(key, 2 * len(skip_channels) + 1)
    ups, ki = [], 0
    for cs in skip_channels:                  # stages in "reversed(upsamples)" order
        bsc, bsh = bn(cs)
        blc, blh = bn(num_maps_in)
        ups.append(dict(
            bot_scale=bsc, bot_shift=bsh,
            w_bot=_kaiming(keys[ki], 1, cs, num_maps_in)[0],               # (Cs, 128)
            blend_scale=blc, blend_shift=blh,
            w_blend=_kaiming(keys[ki + 1], 9, num_maps_in, num_features)))  # (9, 128, 128)
        ki += 2
    lsc, lsh = bn(num_features)
    return dict(
        up=ups,
        logits=dict(scale=lsc, shift=lsh,
                    w=_kaiming(keys[ki], 9, num_features, 3)),              # (9, 128, 3)
        mean=jnp.array([0.485, 0.456, 0.406], F32),
        std=jnp.array([0.229, 0.224, 0.225], F32),
    )


# -----------------------------------------------------------------------------
# SwiftNetDecoder.forward (use_spp=False, use_skips=True), output in NCHW
# -----------------------------------------------------------------------------
# TODO(synk): the use_spp=True branch (SpatialPyramidPooling) is not implemented.
def swiftnet_decoder_forward(params, features, image_size, segmentation, idlc):
    x_nhwc = features[0]                         # deepest feature (N, H/32, W/32, 128)
    skips = features[1][::-1][1:]                # [skip/16, skip/8, skip/4]
    N, cur_h, cur_w, C = x_nhwc.shape
    x_flat = x_nhwc.reshape(N, cur_h * cur_w, C)
    pending = None                               # segmentation merged after previous stage
    for p, skip, seg, merge in zip(params["up"], skips, segmentation, idlc):
        _, hs, ws, cs = skip.shape
        mh = jnp.asarray(_interp_matrix(hs, cur_h), dtype=BF16)
        mw = jnp.asarray(_interp_matrix(ws, cur_w), dtype=BF16)
        add = pending.reshape(N, cur_h, cur_w * C) if pending is not None else None
        u = resize_h(x_flat.reshape(N, cur_h, cur_w * C), mh, add=add)   # H resize (+seg)
        v = resize_w(u.reshape(N, hs, cur_w, C), mw)                     # W resize
        x_flat = conv3x3_bn_relu(                                        # + skip bottleneck,
            v.reshape(N, hs * ws, C),                                    #   BN, ReLU, 3x3
            p["blend_scale"], p["blend_shift"], p["w_blend"].astype(BF16),
            H=hs, W=ws,
            skip=skip.reshape(N, hs * ws, cs),
            bot=(p["bot_scale"], p["bot_shift"], p["w_bot"].astype(BF16)))
        cur_h, cur_w = hs, ws
        pending = seg.reshape(N, hs * ws, C) if merge else None
    lp = params["logits"]
    logits = conv3x3_bn_relu(x_flat, lp["scale"], lp["shift"], lp["w"].astype(BF16),
                             H=cur_h, W=cur_w, add=pending)              # (N, HW, 3)
    hi, wi = image_size
    xt = jnp.transpose(logits.reshape(N, cur_h, cur_w, 3), (0, 3, 1, 2))  # small tensor
    return final_resize_sigmoid_norm(xt, hi, wi, params["mean"], params["std"])


# -----------------------------------------------------------------------------
# Pure-JAX reference at matched precision (bf16 matmul/conv operands, f32
# accumulation — same rounding points as the kernels), PyTorch op order.
# -----------------------------------------------------------------------------
def _bf16(x):
    return x.astype(BF16)


def _ref_bn_relu_conv(x, scale, shift, w_taps, k):
    y = jnp.maximum(x * scale.reshape(1, 1, 1, -1) + shift.reshape(1, 1, 1, -1), 0.0)
    w = w_taps.reshape(k, k, w_taps.shape[-2], w_taps.shape[-1])
    return lax.conv_general_dilated(
        _bf16(y), _bf16(w), (1, 1), "SAME" if k == 3 else "VALID",
        dimension_numbers=("NHWC", "HWIO", "NHWC"),
        preferred_element_type=F32)


def _ref_resize(x, hout, wout):
    _, hin, win, _ = x.shape
    mh = jnp.asarray(_interp_matrix(hout, hin))
    mw = jnp.asarray(_interp_matrix(wout, win))
    t = jnp.einsum("oh,nhwc->nowc", _bf16(mh), _bf16(x), preferred_element_type=F32)
    return jnp.einsum("pw,nowc->nopc", _bf16(mw), _bf16(t), preferred_element_type=F32)


def reference_forward(params, features, image_size, segmentation, idlc):
    x = features[0]
    skips = features[1][::-1][1:]
    for p, skip, seg, merge in zip(params["up"], skips, segmentation, idlc):
        sb = _ref_bn_relu_conv(skip, p["bot_scale"], p["bot_shift"], p["w_bot"], 1)
        x = _ref_resize(x, skip.shape[1], skip.shape[2])
        x = x + sb
        x = _ref_bn_relu_conv(x, p["blend_scale"], p["blend_shift"], p["w_blend"], 3)
        if merge:
            x = x + seg
    lp = params["logits"]
    x = _ref_bn_relu_conv(x, lp["scale"], lp["shift"], lp["w"], 3)
    x = _ref_resize(x, image_size[0], image_size[1])
    s = 1.0 / (1.0 + jnp.exp(-x))
    out = (s - params["mean"].reshape(1, 1, 1, 3)) / params["std"].reshape(1, 1, 1, 3)
    return jnp.transpose(out, (0, 3, 1, 2))      # NCHW, matching the kernel path


if __name__ == "__main__":
    key = jax.random.PRNGKey(0)
    ks = jax.random.split(key, 8)
    n = 2
    image_size = (64, 64)
    # Encoder pyramid (NHWC), inplanes=[16, 32, 64, 128]:
    #   skip 16ch @ H/4, 32ch @ H/8, 64ch @ H/16, deepest 128ch @ H/32.
    deep = jax.random.normal(ks[0], (n, 2, 2, 128), F32)
    s16 = jax.random.normal(ks[1], (n, 4, 4, 64), F32)
    s8 = jax.random.normal(ks[2], (n, 8, 8, 32), F32)
    s4 = jax.random.normal(ks[3], (n, 16, 16, 16), F32)
    features = (deep, [s4, s8, s16, deep])           # matches features[1][::-1][1:] usage
    segmentation = [jax.random.normal(ks[4], (n, 4, 4, 128), F32),
                    jax.random.normal(ks[5], (n, 8, 8, 128), F32),
                    jax.random.normal(ks[6], (n, 16, 16, 128), F32)]
    idlc = [1, 0, 1]                                 # IDLC merge flags per upsample stage
    params = init_params(ks[7], skip_channels=(64, 32, 16))

    out = swiftnet_decoder_forward(params, features, image_size, segmentation, idlc)
    out = jax.block_until_ready(out)
    assert out.shape == (n, 3, image_size[0], image_size[1])

    ref = reference_forward(params, features, image_size, segmentation, idlc)
    np.testing.assert_allclose(np.asarray(out), np.asarray(ref), rtol=5e-3, atol=5e-3)
    print("KERNEL_OK")
</pallas_src>

<mosaic_0001>
module attributes {stable_mosaic.version = 11 : i64} {
  func.func @kernel(%arg0: i32, %arg1: i32, %arg2: memref<4x2xbf16, #tpu.memory_space<vmem>>, %arg3: memref<1x2x128xf32, #tpu.memory_space<vmem>>, %arg4: memref<1x4x128xf32, #tpu.memory_space<vmem>>) attributes {dimension_semantics = [#tpu.dimension_semantics<parallel>, #tpu.dimension_semantics<parallel>], iteration_bounds = array<i64: 2, 2>, scalar_prefetch = 0 : i64, scratch_operands = 0 : i64, tpu.core_type = #tpu.core_type<tc>, window_params = [{pipeline_mode = #tpu.pipeline_mode<synchronous>, transform_indices = @transform_0, window_bounds = array<i64: 4, 2>}, {transform_indices = @transform_1, window_bounds = array<i64: 1, 2, 128>}, {transform_indices = @transform_2, window_bounds = array<i64: 1, 4, 128>}]} {
    %c0 = arith.constant 0 : index
    %c0_0 = arith.constant 0 : index
    %c0_1 = arith.constant 0 : index
    %0 = vector.load %arg3[%c0, %c0_0, %c0_1] : memref<1x2x128xf32, #tpu.memory_space<vmem>>, vector<1x2x128xf32>
    %1 = vector.shape_cast %0 : vector<1x2x128xf32> to vector<2x128xf32>
    %c0_2 = arith.constant 0 : index
    %c0_3 = arith.constant 0 : index
    %2 = vector.load %arg2[%c0_2, %c0_3] : memref<4x2xbf16, #tpu.memory_space<vmem>>, vector<4x2xbf16>
    %3 = arith.truncf %1 : vector<2x128xf32> to vector<2x128xbf16>
    %cst = arith.constant dense<0.000000e+00> : vector<4x128xf32>
    %4 = tpu.matmul %2, %3, %cst {dimension_numbers = #tpu.dot_dimension_numbers<[1], [0], [0], [1], [0, 0, 1, 1], [], []>} : vector<4x2xbf16>, vector<2x128xbf16>, vector<4x128xf32> -> vector<4x128xf32>
    %c0_4 = arith.constant 0 : index
    %c0_5 = arith.constant 0 : index
    %c0_6 = arith.constant 0 : index
    %5 = vector.load %arg4[%c0_4, %c0_5, %c0_6] : memref<1x4x128xf32, #tpu.memory_space<vmem>>, vector<1x4x128xf32>
    %6 = vector.shape_cast %5 : vector<1x4x128xf32> to vector<4x128xf32>
    %7 = vector.shape_cast %4 : vector<4x128xf32> to vector<1x4x128xf32>
    tpu.vector_store %arg4[%c0_4, %c0_5, %c0_6], %7 {strides = array<i32>} : memref<1x4x128xf32, #tpu.memory_space<vmem>>, vector<1x4x128xf32>,
    return
  }
  func.func @transform_0(%arg0: i32, %arg1: i32) -> (i32, i32) {
    %c0_i32 = arith.constant 0 : i32
    %c0_i32_0 = arith.constant 0 : i32
    %c0_i32_1 = arith.constant 0 : i32
    return %c0_i32, %c0_i32_0 : i32, i32
  }
  func.func @transform_1(%arg0: i32, %arg1: i32) -> (i32, i32, i32) {
    %c0_i32 = arith.constant 0 : i32
    %c0_i32_0 = arith.constant 0 : i32
    return %arg0, %c0_i32, %arg1 : i32, i32, i32
  }
  func.func @transform_2(%arg0: i32, %arg1: i32) -> (i32, i32, i32) {
    %c0_i32 = arith.constant 0 : i32
    %c0_i32_0 = arith.constant 0 : i32
    return %arg0, %c0_i32, %arg1 : i32, i32, i32
  }
}

</mosaic_0001>

<llo_original>
// kernel: tpu_custom_call.1
$region0: #{tpu_custom_call.1}
  #allocation0 [shape = 'u32[]', space=smem, size = 0x4, offset = 0x4, fixed_abs, tag = 'smem constant byte address 0x4 - core index']
  #allocation1 [shape = 'u32[144,128]{1,0:T(1,128)}', space=vmem, size = 0x12000, scoped, tag = 'internal scratch']
  %s0 = inlined_call_operand.vmem [shape: bf16[4,2], index: 0, kind: input, shape index: {}]
  %s1 = inlined_call_operand.hbm [shape: f32[2,2,256], index: 1, kind: input, shape index: {}]
  %s2 = inlined_call_operand.hbm [shape: f32[2,4,256], index: 2, kind: output, shape index: {}]
  %s3 = sld [smem:[#allocation0]]
  $region45: #{tpu_custom_call.1} parent=0
    _
  %s5 = ssub.s32 1, %s3
  %s6 = scalar_select 0, %s5, %s3
  $region1: #{tpu_custom_call.1} parent=0
    #allocation2 [shape = 'u8[2048]{0}', space=vmem, size = 0x800, scoped, tag = 'input window, operand 1']
    #allocation3 [shape = 's32[2]{0}', space=sflag, size = 0x8, scoped, tag = 'scoped memory for tpu_custom_call.1']
    #allocation4 [shape = 's32[2]{0}', space=sflag, size = 0x8, scoped, tag = 'scoped memory for tpu_custom_call.1']
    #allocation5 [shape = 'u8[4096]{0}', space=vmem, size = 0x1000, scoped, tag = 'output window, operand 0']
    %7 = vsyncpa [#allocation3], 0
    %s8 = scalar_lea.sflag [#allocation3], 1
    %9 = vsyncpa %s8, 0
    %10 = vsyncpa [#allocation4], 0
    %s11 = scalar_lea.sflag [#allocation4], 1
    %12 = vsyncpa %s11, 0
    loop: start=0, step=1, limit=6
    $region2: #{tpu_custom_call.1} parent=1 // loop_pre_header
      _
    $region3: #{tpu_custom_call.1} parent=1 // loop_header
      %s14 = sphi 0, %s18
      %p15 = scmp.ge.s32.totalorder %s14, 6
      %s21 = sphi 0, %s33
      %s22 = sphi 0, %s29
      %s23 = sphi 0, %s21
      %s24 = sphi 0, %s22
      %s25 = sphi 0, %s23
      %s26 = sphi 0, %s24
      %s34 = sphi 0, %s34
      %s36 = sphi 0, %s34
      %s37 = sphi 0, %s36
      %s51 = sphi 0, %s37
      %s59 = sphi 0, %s61
      %s62 = sphi 0, %s59
      %s63 = sphi 0, %s62
      %s79 = sphi 0, %s63
      %s87 = sphi 0, %s89
      %s90 = sphi 0, %s87
      %s91 = sphi 0, %s90
      %s107 = sphi 0, %s91
    $region4: #{tpu_custom_call.1} parent=1 // loop_header_branch
      %17 = sbr.rel (%p15) target = $region8
    $region5: #{tpu_custom_call.1} parent=1 // loop_body
      %s19 = ssub.s32 %s14, 1
      %s20 = ssub.s32 %s14, 2
      %s27 = sadd.s32 1, %s22
      %p28 = scmp.ge.s32.totalorder %s27, 2
      %s29 = scalar_select %p28, 0, %s27
      %s30 = sadd.s32 1, %s21
      %s31 = scalar_select %p28, %s30, %s21
      %p32 = scmp.ge.s32.totalorder %s31, 2
      %s33 = scalar_select %p32, 0, %s31
      %s35 = sadd.s32 %s34, 1
      %p38 = scmp.eq.s32.totalorder %s14, 3
      %p39 = scmp.ne.s32.totalorder %s34, %s36
      %p40 = scmp.eq.s32.totalorder %s14, 0
      %p41 = por %p39, %p40
      %p42 = scmp.ne.s32.totalorder %s34, %s36
      %p43 = scmp.eq.s32.totalorder %s19, 3
      %p44 = por %p42, %p43
      %p45 = scmp.ne.s32.totalorder %s36, %s37
      %p46 = scmp.eq.s32.totalorder %s19, 0
      %p47 = por %p45, %p46
      %p48 = scmp.ne.s32.totalorder %s36, %s37
      %p49 = scmp.eq.s32.totalorder %s20, 3
      %p50 = por %p48, %p49
      %p52 = scmp.ne.s32.totalorder %s37, %s51
      %p53 = scmp.eq.s32.totalorder %s20, 0
      %p54 = por %p52, %p53
      %s55 = ssub.s32 %s21, %s33
      %s56 = ssub.s32 %s22, %s29
      %s57 = sor.u32 %s55, %s56
      %p58 = scmp.eq.s32.totalorder %s57, 0
      %s60 = sadd.s32 %s59, 1
      %s61 = scalar_select %p58, %s59, %s60
      %p64 = pneg %p58
      %p65 = scmp.eq.s32.totalorder %s14, 3
      %p66 = por %p64, %p65
      %p67 = scmp.ne.s32.totalorder %s59, %s62
      %p68 = scmp.eq.s32.totalorder %s14, 0
      %p69 = por %p67, %p68
      %p70 = scmp.ne.s32.totalorder %s59, %s62
      %p71 = scmp.eq.s32.totalorder %s19, 3
      %p72 = por %p70, %p71
      %p73 = scmp.ne.s32.totalorder %s62, %s63
      %p74 = scmp.eq.s32.totalorder %s19, 0
      %p75 = por %p73, %p74
      %p76 = scmp.ne.s32.totalorder %s62, %s63
      %p77 = scmp.eq.s32.totalorder %s20, 3
      %p78 = por %p76, %p77
      %p80 = scmp.ne.s32.totalorder %s63, %s79
      %p81 = scmp.eq.s32.totalorder %s20, 0
      %p82 = por %p80, %p81
      %s83 = ssub.s32 %s21, %s33
      %s84 = ssub.s32 %s22, %s29
      %s85 = sor.u32 %s83, %s84
      %p86 = scmp.eq.s32.totalorder %s85, 0
      %s88 = sadd.s32 %s87, 1
      %s89 = scalar_select %p86, %s87, %s88
      %p92 = pneg %p86
      %p93 = scmp.eq.s32.totalorder %s14, 3
      %p94 = por %p92, %p93
      %p95 = scmp.ne.s32.totalorder %s87, %s90
      %p96 = scmp.eq.s32.totalorder %s14, 0
      %p97 = por %p95, %p96
      %p98 = scmp.ne.s32.totalorder %s87, %s90
      %p99 = scmp.eq.s32.totalorder %s19, 3
      %p100 = por %p98, %p99
      %p101 = scmp.ne.s32.totalorder %s90, %s91
      %p102 = scmp.eq.s32.totalorder %s19, 0
      %p103 = por %p101, %p102
      %p104 = scmp.ne.s32.totalorder %s90, %s91
      %p105 = scmp.eq.s32.totalorder %s20, 3
      %p106 = por %p104, %p105
      %p108 = scmp.ne.s32.totalorder %s91, %s107
      %p109 = scmp.eq.s32.totalorder %s20, 0
      %p110 = por %p108, %p109
      %p111 = scmp.le.s32.totalorder 1, %s14
      %p112 = scmp.lt.s32.totalorder %s14, 5
      %p113 = pnand %p111, %p112
      %p114 = pneg %p113
      // Predicated region
      $region9: #{tpu_custom_call.1} parent=5 // pred_check
        _
      $region10: #{tpu_custom_call.1} parent=5 // pred_check_branch
        %116 = sbr.rel (%p113) target = $region12
      $region11: #{tpu_custom_call.1} parent=5 // pred_region
        %s117 = ssub.s32 %s14, 1
        // Predicated region
        $region13: #{tpu_custom_call.1} parent=11 // pred_check
          %p118 = pneg %p47
        $region14: #{tpu_custom_call.1} parent=11 // pred_check_branch
          %120 = sbr.rel (%p118) target = $region16
        $region15: #{tpu_custom_call.1} parent=11 // pred_region
          _
        $region16: #{tpu_custom_call.1} parent=11 // pred_fallthru
          _
      $region12: #{tpu_custom_call.1} parent=5 // pred_fallthru
        _
      %p121 = scmp.lt.s32.totalorder %s14, 4
      // Predicated region
      $region17: #{tpu_custom_call.1} parent=5 // pred_check
        %p122 = pneg %p121
      $region18: #{tpu_custom_call.1} parent=5 // pred_check_branch
        %124 = sbr.rel (%p122) target = $region20
      $region19: #{tpu_custom_call.1} parent=5 // pred_region
        // Predicated region
        $region21: #{tpu_custom_call.1} parent=19 // pred_check
          %p125 = pneg %p69
        $region22: #{tpu_custom_call.1} parent=19 // pred_check_branch
          %127 = sbr.rel (%p125) target = $region24
        $region23: #{tpu_custom_call.1} parent=19 // pred_region
          %s128 = sand.u32 %s59, 1
          %s129 = scalar_lea.sflag [#allocation3], %s128
          %s130 = sand.u32 %s59, 1
          %s131 = smul.addr %s130, 2
          %s132 = scalar_lea.vmem [#allocation2], %s131
          %s134 = ssub.s32 32, 32
          %135 = vsyncadd %s129, %s134
          %s136 = smul.addr %s21, 2
          %s137 = sadd.s32 %s22, %s136
          %s138 = smul.addr %s137, 32
          %s139 = scalar_lea.hbm %s1, %s138
          %s141 = sshll.u32 %s132, 4
          %s142 = int_to_ptr.vmem [resolvable:$true] %s141
          %144 = dma.hbm_to_vmem [thread:$0]  %s139, 32, %s142, %s129
        $region24: #{tpu_custom_call.1} parent=19 // pred_fallthru
          _
      $region20: #{tpu_custom_call.1} parent=5 // pred_fallthru
        _
      %p145 = scmp.le.s32.totalorder 1, %s14
      %p146 = scmp.lt.s32.totalorder %s14, 5
      %p147 = pnand %p145, %p146
      %p148 = pneg %p147
      // Predicated region
      $region25: #{tpu_custom_call.1} parent=5 // pred_check
        _
      $region26: #{tpu_custom_call.1} parent=5 // pred_check_branch
        %150 = sbr.rel (%p147) target = $region28
      $region27: #{tpu_custom_call.1} parent=5 // pred_region
        %s151 = ssub.s32 %s14, 1
        %s152 = sand.u32 %s62, 1
        %s153 = scalar_lea.sflag [#allocation3], %s152
        %s154 = sand.u32 %s62, 1
        %s155 = smul.addr %s154, 2
        %s156 = scalar_lea.vmem [#allocation2], %s155
        // Predicated region
        $region29: #{tpu_custom_call.1} parent=27 // pred_check
          %p157 = pneg %p75
        $region30: #{tpu_custom_call.1} parent=27 // pred_check_branch
          %159 = sbr.rel (%p157) target = $region32
        $region31: #{tpu_custom_call.1} parent=27 // pred_region
          %160 = dma.done %s153, 32
        $region32: #{tpu_custom_call.1} parent=27 // pred_fallthru
          _
        %p161 = pneg %p47
        %p162 = pneg %p44
        %s163 = sand.u32 %s62, 1
        %s164 = scalar_lea.sflag [#allocation3], %s163
        %s165 = sand.u32 %s62, 1
        %s166 = smul.addr %s165, 2
        %s167 = scalar_lea.vmem [#allocation2], %s166
        %p168 = pneg %p75
        %p169 = pneg %p72
        %p170 = pneg %p103
        %p171 = pneg %p100
        %s172 = sand.u32 %s90, 1
        %s173 = scalar_lea.sflag [#allocation4], %s172
        %s174 = sand.u32 %s90, 1
        %s175 = smul.addr %s174, 4
        %s176 = scalar_lea.vmem [#allocation5], %s175
        %v178 = vld [vmem:[%s156] sm:$0x3]
        %v179 = vld [vmem:[%s0] sm:$0x3]
        %v180 = vpack.c.bf16 %v178, %v178
        %vm181 = vcmask 15360
        %v183 = vsel %vm181, %v179, 0
        %vm185 = vcmask 1040384
        %v187 = vsel %vm185, %v180, 0
        %189 = vmatprep.subr.bf16.mxu0 0
        %190 = vmatpush1.bf16.msra.mxu0 %v187
        %191 = vmatprep.subr.bf16.mxu0 0
        %192 = vmatpush1.bf16.msra.mxu0 0
        %193 = vmatprep.subr.bf16.mxu0 0
        %194 = vmatpush1.bf16.msra.mxu0 0
        %195 = vmatprep.subr.bf16.mxu0 0
        %196 = vmatpush1.bf16.msra.mxu0 0
        %197 = vmatprep.subr.bf16.mxu0 0
        %198 = vmatpush1.bf16.msra.mxu0 0
        %199 = vmatprep.subr.bf16.mxu0 0
        %200 = vmatpush1.bf16.msra.mxu0 0
        %201 = vmatprep.subr.bf16.mxu0 0
        %202 = vmatpush1.bf16.msra.mxu0 0
        %203 = vmatprep.subr.bf16.mxu0 0
        %204 = vmatpush1.bf16.msra.mxu0 0
        %205 = vmatprep.subr.bf16.mxu0 0
        %206 = vmatpush1.bf16.msra.mxu0 0
        %207 = vmatprep.subr.bf16.mxu0 0
        %208 = vmatpush1.bf16.msra.mxu0 0
        %209 = vmatprep.subr.bf16.mxu0 0
        %210 = vmatpush1.bf16.msra.mxu0 0
        %211 = vmatprep.subr.bf16.mxu0 0
        %212 = vmatpush1.bf16.msra.mxu0 0
        %213 = vmatprep.subr.bf16.mxu0 0
        %214 = vmatpush1.bf16.msra.mxu0 0
        %215 = vmatprep.subr.bf16.mxu0 0
        %216 = vmatpush1.bf16.msra.mxu0 0
        %217 = vmatprep.subr.bf16.mxu0 0
        %218 = vmatpush1.bf16.msra.mxu0 0
        %219 = vmatprep.subr.bf16.mxu0 0
        %220 = vmatpush1.bf16.msra.mxu0 0
        %221 = vmatprep.mubr.bf16.mxu0 0
        %222 = vmatmul.mubr.bf16.gmra.mrb[0].mxu0 %v183
        %v223 = vpop.f32.mrb[0].mxu0
        %v224 = vadd.f32 0.0, %v223
        %v225 = vpop.f32.mrb[0].mxu0
        %v226 = vpop.f32.mrb[0].mxu0
        %v227 = vpop.f32.mrb[0].mxu0
        %228 = vdwg.mxu0
        %229 = vst [vmem:[%s176] sm:$0xf] %v224
        %s230 = sand.u32 %s90, 1
        %s231 = scalar_lea.sflag [#allocation4], %s230
        %s232 = sand.u32 %s90, 1
        %s233 = smul.addr %s232, 4
        %s234 = scalar_lea.vmem [#allocation5], %s233
        // Predicated region
        $region33: #{tpu_custom_call.1} parent=27 // pred_check
          %p235 = pneg %p100
        $region34: #{tpu_custom_call.1} parent=27 // pred_check_branch
          %237 = sbr.rel (%p235) target = $region36
        $region35: #{tpu_custom_call.1} parent=27 // pred_region
          %s239 = ssub.s32 64, 64
          %240 = vsyncadd %s231, %s239
          %s241 = smul.addr %s23, 2
          %s242 = sadd.s32 %s24, %s241
          %s243 = smul.addr %s242, 64
          %s244 = scalar_lea.hbm %s2, %s243
          %s246 = sshll.u32 %s234, 4
          %s247 = int_to_ptr.vmem [resolvable:$true] %s246
          %249 = dma.vmem_to_hbm [thread:$0]  %s247, 64, %s244, %s231
        $region36: #{tpu_custom_call.1} parent=27 // pred_fallthru
          _
      $region28: #{tpu_custom_call.1} parent=5 // pred_fallthru
        _
      %p250 = scmp.le.s32.totalorder 2, %s14
      // Predicated region
      $region37: #{tpu_custom_call.1} parent=5 // pred_check
        %p251 = pneg %p250
      $region38: #{tpu_custom_call.1} parent=5 // pred_check_branch
        %253 = sbr.rel (%p251) target = $region40
      $region39: #{tpu_custom_call.1} parent=5 // pred_region
        %s254 = ssub.s32 %s14, 2
        // Predicated region
        $region41: #{tpu_custom_call.1} parent=39 // pred_check
          %p255 = pneg %p106
        $region42: #{tpu_custom_call.1} parent=39 // pred_check_branch
          %257 = sbr.rel (%p255) target = $region44
        $region43: #{tpu_custom_call.1} parent=39 // pred_region
          %s258 = sand.u32 %s91, 1
          %s259 = scalar_lea.sflag [#allocation4], %s258
          %s260 = sand.u32 %s91, 1
          %s261 = smul.addr %s260, 4
          %s262 = scalar_lea.vmem [#allocation5], %s261
          %263 = dma.done %s259, 64
        $region44: #{tpu_custom_call.1} parent=39 // pred_fallthru
          _
      $region40: #{tpu_custom_call.1} parent=5 // pred_fallthru
        _
    $region6: #{tpu_custom_call.1} parent=1 // loop_footer
      %s18 = sadd.s32 1, %s14
    $region7: #{tpu_custom_call.1} parent=1 // loop_footer_branch
      %13 = sbr.rel target = $region3
    $region8: #{tpu_custom_call.1} parent=1 // loop_exit
      _
    %264 = vsyncpa [#allocation3], 1
    %s265 = scalar_lea.sflag [#allocation3], 1
    %266 = vsyncpa %s265, 1
    %267 = vsyncpa [#allocation4], 1
    %s268 = scalar_lea.sflag [#allocation4], 1
    %269 = vsyncpa %s268, 1

</llo_original>
